<compile_context>
chip_gen: v6e
topology: v6e:2x2x1
jax: 0.10.0
libtpu: 0.0.40
codegen_flags: <defaults>
</compile_context>

<pallas_src>
import functools
import math

import jax
import jax.numpy as jnp
from jax import lax
from jax.experimental import pallas as pl
from jax.experimental.pallas import tpu as pltpu

MASK_VALUE = -0.7 * float(jnp.finfo(jnp.float32).max)

_DN_TRANS_B = (((1,), (1,)), ((), ()))  # y = a @ b^T (contract last dims)


# --------------------------- per-generation tuning ---------------------------

def _tpu_defaults():
    """(vmem_limit_bytes, blk_q_target, blk_k_target) per TPU generation."""
    kind = ""
    try:
        kind = jax.devices()[0].device_kind.lower()
    except Exception:
        pass
    if "v5 lite" in kind or "v5e" in kind:        # v5e: lowest HBM BW, 128 MiB VMEM
        return 96 * 1024 * 1024, 512, 512
    if "v6" in kind or "trillium" in kind:        # v6e: 128 MiB VMEM, 256-wide MXU
        return 96 * 1024 * 1024, 512, 512
    if "v7" in kind:                              # v7x: 64 MiB VMEM per TensorCore
        return 48 * 1024 * 1024, 256, 256
    return 32 * 1024 * 1024, 256, 256             # unknown: conservative


def _seq_block(S, target):
    """Largest sequence tile <= target that divides S (prefer 128-multiples)."""
    if S <= target:
        return S
    for blk in range(target, 127, -128):
        if S % blk == 0:
            return blk
    for blk in range(target, 7, -8):
        if S % blk == 0:
            return blk
    return S


def _resident_spec(block_shape, index_map):
    """Constant-index (weight) tile: single-buffered when the installed Pallas
    supports pipeline_mode; plain double-buffered spec otherwise."""
    try:
        return pl.BlockSpec(block_shape, index_map, pipeline_mode=pl.Buffered(1))
    except Exception:
        return pl.BlockSpec(block_shape, index_map)


# --------------------------- weight / table prep ----------------------------

def _fold_rope_rotation(w, num_heads):
    """rotate_half(x @ W^T) == x @ W_rot^T, W_rot an exact signed row perm of W."""
    H = w.shape[0]
    hd = H // num_heads
    hd2 = hd // 2
    w4 = w.reshape(num_heads, hd, H)
    return jnp.concatenate([-w4[:, hd2:, :], w4[:, :hd2, :]], axis=1).reshape(H, H)


def _rope_tables(S, H, num_heads, theta):
    hd = H // num_heads
    inv_freq = 1.0 / (theta ** (jnp.arange(0, hd, 2, dtype=jnp.float32) / hd))
    freqs = jnp.arange(S, dtype=jnp.float32)[:, None] * inv_freq[None, :]   # (S, hd/2)
    cos = jnp.concatenate([jnp.cos(freqs), jnp.cos(freqs)], axis=-1)        # (S, hd)
    sin = jnp.concatenate([jnp.sin(freqs), jnp.sin(freqs)], axis=-1)
    # per-head layout along H: [head0 hd | head1 hd | ...]
    return jnp.tile(cos, (1, num_heads)), jnp.tile(sin, (1, num_heads))     # (S, H)


# ------------------------------ Pallas kernels -------------------------------

def _qkv_rope_kernel(x_ref, w_ref, cos_ref, sin_ref, q_ref, k_ref, v_ref, *, H):
    """One fused matmul: x @ [Wq; Wq_rot; Wk; Wk_rot; Wv]^T, then RoPE fold."""
    x = x_ref[0]                                                   # (blk_s, H)
    y = lax.dot_general(x, w_ref[...], _DN_TRANS_B,
                        preferred_element_type=jnp.float32)        # (blk_s, 5H) f32
    cos = cos_ref[...]                                             # (blk_s, H) f32
    sin = sin_ref[...]
    q_ref[0] = (y[:, 0 * H:1 * H] * cos + y[:, 1 * H:2 * H] * sin).astype(q_ref.dtype)
    k_ref[0] = (y[:, 2 * H:3 * H] * cos + y[:, 3 * H:4 * H] * sin).astype(k_ref.dtype)
    v_ref[0] = y[:, 4 * H:5 * H].astype(v_ref.dtype)


def _flash_attn_kernel(*refs, num_heads, head_dim, scale, causal, has_mask,
                       blk_q, blk_k):
    if has_mask:
        q_ref, k_ref, v_ref, mask_ref, wo_ref, o_ref, m_scr, l_scr, acc_scr = refs
    else:
        q_ref, k_ref, v_ref, wo_ref, o_ref, m_scr, l_scr, acc_scr = refs
        mask_ref = None

    q_i = pl.program_id(1)
    kv_i = pl.program_id(2)

    @pl.when(kv_i == 0)
    def _init():
        m_scr[...] = jnp.full_like(m_scr, MASK_VALUE)
        l_scr[...] = jnp.zeros_like(l_scr)
        acc_scr[...] = jnp.zeros_like(acc_scr)

    def _update():
        q = q_ref[0]            # (blk_q, H), compute dtype
        k = k_ref[0]            # (blk_k, H)
        v = v_ref[0]

        if has_mask:
            bias = mask_ref[...].astype(jnp.float32)               # (blk_q, blk_k)
        elif causal:
            q_pos = q_i * blk_q + lax.broadcasted_iota(jnp.int32, (blk_q, blk_k), 0)
            k_pos = kv_i * blk_k + lax.broadcasted_iota(jnp.int32, (blk_q, blk_k), 1)
            bias = jnp.where(k_pos <= q_pos, 0.0, MASK_VALUE)
        else:
            bias = None

        # One lane-dense load of running stats per kv step (not per head).
        m_prev = m_scr[...]     # (blk_q, NH) f32
        l_prev = l_scr[...]     # (blk_q, NH) f32
        acc_prev = acc_scr[...]  # (blk_q, H)  f32

        m_cols, l_cols, alpha_cols, pv_cols = [], [], [], []
        # TODO(synk): convert to lax.fori_loop + pl.ds for num_heads >= 8 to
        # bound live ranges / code size on many-head configs.
        for h in range(num_heads):
            sl = slice(h * head_dim, (h + 1) * head_dim)
            s = lax.dot_general(q[:, sl], k[:, sl], _DN_TRANS_B,
                                preferred_element_type=jnp.float32) * scale
            if bias is not None:
                s = s + bias
            m_prev_h = m_prev[:, h:h + 1]
            m_new_h = jnp.maximum(m_prev_h, jnp.max(s, axis=-1, keepdims=True))
            alpha_h = jnp.exp(m_prev_h - m_new_h)
            p = jnp.exp(s - m_new_h)
            l_cols.append(alpha_h * l_prev[:, h:h + 1]
                          + jnp.sum(p, axis=-1, keepdims=True))
            pv_cols.append(jnp.dot(p.astype(v.dtype), v[:, sl],
                                   preferred_element_type=jnp.float32))
            m_cols.append(m_new_h)
            alpha_cols.append(jnp.broadcast_to(alpha_h, (blk_q, head_dim)))

        # One lane-dense store per scratch per kv step.
        m_scr[...] = jnp.concatenate(m_cols, axis=-1)
        l_scr[...] = jnp.concatenate(l_cols, axis=-1)
        acc_scr[...] = (jnp.concatenate(alpha_cols, axis=-1) * acc_prev
                        + jnp.concatenate(pv_cols, axis=-1))

    if causal and not has_mask:
        # Compute skipped above the diagonal; DMAs already avoided by the
        # clamped K/V index_map in the wrapper.
        pl.when(kv_i * blk_k <= q_i * blk_q + (blk_q - 1))(_update)
    else:
        _update()

    @pl.when(kv_i == pl.num_programs(2) - 1)
    def _finalize():
        inv_l = pl.reciprocal(l_scr[...], approx=True)             # EUP, (blk_q, NH)
        inv_full = jnp.concatenate(
            [jnp.broadcast_to(inv_l[:, h:h + 1], (blk_q, head_dim))
             for h in range(num_heads)], axis=-1)                  # (blk_q, H)
        attn = (acc_scr[...] * inv_full).astype(wo_ref.dtype)
        # Fused output projection: attn @ Wo^T against the resident Wo tile.
        o_ref[0] = lax.dot_general(attn, wo_ref[...], _DN_TRANS_B,
                                   preferred_element_type=jnp.float32
                                   ).astype(o_ref.dtype)


# ------------------------------ pallas_call wrappers --------------------------

def _qkv_rope(x, w_qkv, cos, sin, blk_s, vmem_limit):
    B, S, H = x.shape
    out = jax.ShapeDtypeStruct((B, S, H), w_qkv.dtype)
    xo_spec = pl.BlockSpec((1, blk_s, H), lambda b, i: (b, i, 0))
    t_spec = pl.BlockSpec((blk_s, H), lambda b, i: (i, 0))
    w_spec = _resident_spec((5 * H, H), lambda b, i: (0, 0))
    return pl.pallas_call(
        functools.partial(_qkv_rope_kernel, H=H),
        grid=(B, S // blk_s),
        in_specs=[xo_spec, w_spec, t_spec, t_spec],
        out_specs=[xo_spec, xo_spec, xo_spec],
        out_shape=[out, out, out],
        compiler_params=pltpu.CompilerParams(
            dimension_semantics=("parallel", "parallel"),
            vmem_limit_bytes=vmem_limit),
    )(x, w_qkv, cos, sin)


def _flash_attention(q, k, v, wo, num_heads, mask2d, causal, blk_q, blk_k,
                     out_dtype, vmem_limit):
    B, S, H = q.shape
    hd = H // num_heads
    scale = 1.0 / math.sqrt(hd)
    has_mask = mask2d is not None

    kernel = functools.partial(
        _flash_attn_kernel, num_heads=num_heads, head_dim=hd, scale=scale,
        causal=causal, has_mask=has_mask, blk_q=blk_q, blk_k=blk_k)

    q_spec = pl.BlockSpec((1, blk_q, H), lambda b, qi, ki: (b, qi, 0))
    if causal and not has_mask:
        # Clamp fully-masked kv blocks to the last useful block: same block
        # index as the previous step -> the pipeline issues no extra DMA.
        def kv_idx(b, qi, ki):
            return (b, jnp.minimum(ki, (qi * blk_q + blk_q - 1) // blk_k), 0)
    else:
        def kv_idx(b, qi, ki):
            return (b, ki, 0)
    kv_spec = pl.BlockSpec((1, blk_k, H), kv_idx)

    in_specs = [q_spec, kv_spec, kv_spec]
    args = [q, k, v]
    if has_mask:
        in_specs.append(pl.BlockSpec((blk_q, blk_k), lambda b, qi, ki: (qi, ki)))
        args.append(mask2d)
    in_specs.append(_resident_spec((H, H), lambda b, qi, ki: (0, 0)))
    args.append(wo)

    return pl.pallas_call(
        kernel,
        grid=(B, S // blk_q, S // blk_k),
        in_specs=in_specs,
        out_specs=pl.BlockSpec((1, blk_q, H), lambda b, qi, ki: (b, qi, 0)),
        out_shape=jax.ShapeDtypeStruct((B, S, H), out_dtype),
        scratch_shapes=[
            pltpu.VMEM((blk_q, num_heads), jnp.float32),   # running max
            pltpu.VMEM((blk_q, num_heads), jnp.float32),   # running denominator
            pltpu.VMEM((blk_q, H), jnp.float32),           # output accumulator
        ],
        compiler_params=pltpu.CompilerParams(
            dimension_semantics=("parallel", "parallel", "arbitrary"),
            vmem_limit_bytes=vmem_limit),
    )(*args)


def timer_attention(x, wq, wk, wv, wo, num_heads, rope_theta=10000.0,
                    attention_mask=None, causal=False, compute_dtype=None):
    """TimerAttention forward.  `attention_mask` is an additive mask
    broadcastable from (S, S); `causal=True` builds the causal mask in-kernel
    (no HBM mask, no above-diagonal K/V DMAs).  Dropout is a no-op (eval)."""
    B, S, H = x.shape
    assert H % num_heads == 0
    assert (H // num_heads) % 2 == 0, "RoPE head_dim must be even"
    assert not (causal and attention_mask is not None), \
        "pass either an explicit additive mask or causal=True, not both"

    if compute_dtype is None:
        compute_dtype = x.dtype   # pass jnp.bfloat16 for bf16-native MXU matmuls

    vmem_limit, tq, tk = _tpu_defaults()
    blk_q = _seq_block(S, tq)     # QKV-projection / query tile
    blk_k = _seq_block(S, tk)     # key/value tile (decoupled from blk_q)

    mask2d = None
    if attention_mask is not None:
        am = jnp.asarray(attention_mask)
        lead = am.shape[:-2]
        # TODO(synk): per-(batch, head) additive masks would need a 4-D mask
        # BlockSpec; only masks broadcastable from (S, S) are streamed here.
        assert all(d == 1 for d in lead), "mask must be broadcastable from (S, S)"
        mask2d = jnp.broadcast_to(am, lead + (S, S)).reshape(S, S).astype(compute_dtype)

    # Weight prep (once): fused QKV weight with the RoPE rotation folded in.
    w_qkv = jnp.concatenate(
        [wq, _fold_rope_rotation(wq, num_heads),
         wk, _fold_rope_rotation(wk, num_heads), wv], axis=0).astype(compute_dtype)
    wo_c = jnp.asarray(wo).astype(compute_dtype)
    cos, sin = _rope_tables(S, H, num_heads, rope_theta)

    q, k, v = _qkv_rope(x.astype(compute_dtype), w_qkv, cos, sin, blk_q, vmem_limit)
    return _flash_attention(q, k, v, wo_c, num_heads, mask2d, causal,
                            blk_q, blk_k, x.dtype, vmem_limit)


# ------------------------------ Pure-JAX reference ----------------------------

def _rope_ref(x, theta):
    S, hd = x.shape[1], x.shape[-1]
    inv = 1.0 / (theta ** (jnp.arange(0, hd, 2, dtype=jnp.float32) / hd))
    f = jnp.arange(S, dtype=jnp.float32)[:, None] * inv[None, :]
    cos = jnp.concatenate([jnp.cos(f), jnp.cos(f)], -1)[None, :, None, :]
    sin = jnp.concatenate([jnp.sin(f), jnp.sin(f)], -1)[None, :, None, :]
    x1, x2 = x[..., : hd // 2], x[..., hd // 2:]
    c1, c2 = cos[..., : hd // 2], cos[..., hd // 2:]
    s1, s2 = sin[..., : hd // 2], sin[..., hd // 2:]
    return jnp.concatenate([x1 * c1 - x2 * s1, x1 * s2 + x2 * c2], -1)


def timer_attention_ref(x, wq, wk, wv, wo, num_heads, rope_theta, attention_mask):
    B, S, H = x.shape
    hd = H // num_heads
    q = (x @ wq.T).reshape(B, S, num_heads, hd)
    k = (x @ wk.T).reshape(B, S, num_heads, hd)
    v = (x @ wv.T).reshape(B, S, num_heads, hd)
    q = _rope_ref(q, rope_theta)
    k = _rope_ref(k, rope_theta)
    q = jnp.transpose(q, (0, 2, 1, 3))
    k = jnp.transpose(k, (0, 2, 1, 3))
    v = jnp.transpose(v, (0, 2, 1, 3))
    scores = jnp.einsum("bhqd,bhkd->bhqk", q, k) / math.sqrt(hd)
    if attention_mask is not None:
        scores = scores + attention_mask
    w = jax.nn.softmax(scores, axis=-1)
    o = jnp.einsum("bhqk,bhkd->bhqd", w, v)
    o = jnp.transpose(o, (0, 2, 1, 3)).reshape(B, S, H)
    return o @ wo.T


# ------------------------------------ main ------------------------------------

if __name__ == "__main__":
    B, S, H, NH = 2, 8, 32, 4   # batch=2, seq=8, hidden=32, heads=4 (head_dim=8)
    THETA = 10000.0

    key = jax.random.PRNGKey(0)
    kx, kq, kk, kv_, ko = jax.random.split(key, 5)
    x = jax.random.normal(kx, (B, S, H), dtype=jnp.float32)
    # torch-style Linear weights: (out_features, in_features), bias=False
    wq = jax.random.normal(kq, (H, H), dtype=jnp.float32) * 0.1
    wk = jax.random.normal(kk, (H, H), dtype=jnp.float32) * 0.1
    wv = jax.random.normal(kv_, (H, H), dtype=jnp.float32) * 0.1
    wo = jax.random.normal(ko, (H, H), dtype=jnp.float32) * 0.1

    idx = jnp.arange(S)
    causal_add = jnp.where(idx[None, :] <= idx[:, None], 0.0, -1e9).astype(jnp.float32)

    # 1) causal mask generated in-kernel (no HBM mask, no above-diagonal DMAs)
    out_causal = jax.block_until_ready(
        timer_attention(x, wq, wk, wv, wo, NH, THETA, attention_mask=None, causal=True))
    ref_causal = timer_attention_ref(x, wq, wk, wv, wo, NH, THETA,
                                     causal_add[None, None, :, :])
    assert out_causal.shape == (B, S, H)
    assert jnp.allclose(out_causal, ref_causal, rtol=2e-3, atol=2e-3), \
        "causal (in-kernel mask) output mismatch vs reference"

    # 2) explicit additive mask streamed as (blk_q, blk_k) tiles of one (S, S) table
    out_masked = jax.block_until_ready(
        timer_attention(x, wq, wk, wv, wo, NH, THETA,
                        attention_mask=causal_add[None, None, :, :]))
    assert jnp.allclose(out_masked, ref_causal, rtol=2e-3, atol=2e-3), \
        "explicit-mask output mismatch vs reference"

    # 3) no mask
    out_plain = jax.block_until_ready(
        timer_attention(x, wq, wk, wv, wo, NH, THETA))
    ref_plain = timer_attention_ref(x, wq, wk, wv, wo, NH, THETA, None)
    assert jnp.allclose(out_plain, ref_plain, rtol=2e-3, atol=2e-3), \
        "no-mask output mismatch vs reference"

    print("KERNEL_OK")
</pallas_src>

<mosaic_0001>
module attributes {stable_mosaic.version = 11 : i64} {
  func.func @_qkv_rope_kernel(%arg0: i32, %arg1: i32, %arg2: memref<1x8x32xf32, #tpu.memory_space<vmem>>, %arg3: memref<160x32xf32, #tpu.memory_space<vmem>>, %arg4: memref<8x32xf32, #tpu.memory_space<vmem>>, %arg5: memref<8x32xf32, #tpu.memory_space<vmem>>, %arg6: memref<1x8x32xf32, #tpu.memory_space<vmem>>, %arg7: memref<1x8x32xf32, #tpu.memory_space<vmem>>, %arg8: memref<1x8x32xf32, #tpu.memory_space<vmem>>) attributes {dimension_semantics = [#tpu.dimension_semantics<parallel>, #tpu.dimension_semantics<parallel>], iteration_bounds = array<i64: 2, 1>, scalar_prefetch = 0 : i64, scratch_operands = 0 : i64, tpu.core_type = #tpu.core_type<tc>, window_params = [{transform_indices = @transform_0, window_bounds = array<i64: 1, 8, 32>}, {pipeline_mode = #tpu.pipeline_mode<synchronous>, transform_indices = @transform_1, window_bounds = array<i64: 160, 32>}, {transform_indices = @transform_2, window_bounds = array<i64: 8, 32>}, {transform_indices = @transform_3, window_bounds = array<i64: 8, 32>}, {transform_indices = @transform_4, window_bounds = array<i64: 1, 8, 32>}, {transform_indices = @transform_5, window_bounds = array<i64: 1, 8, 32>}, {transform_indices = @transform_6, window_bounds = array<i64: 1, 8, 32>}]} {
    %c0 = arith.constant 0 : index
    %c0_0 = arith.constant 0 : index
    %c0_1 = arith.constant 0 : index
    %0 = vector.load %arg2[%c0, %c0_0, %c0_1] : memref<1x8x32xf32, #tpu.memory_space<vmem>>, vector<1x8x32xf32>
    %1 = vector.shape_cast %0 : vector<1x8x32xf32> to vector<8x32xf32>
    %c0_2 = arith.constant 0 : index
    %c0_3 = arith.constant 0 : index
    %2 = vector.load %arg3[%c0_2, %c0_3] : memref<160x32xf32, #tpu.memory_space<vmem>>, vector<160x32xf32>
    %cst = arith.constant dense<0.000000e+00> : vector<8x160xf32>
    %3 = tpu.matmul %1, %2, %cst {dimension_numbers = #tpu.dot_dimension_numbers<[1], [1], [0], [0], [0, 0, 1, 0], [], []>} : vector<8x32xf32>, vector<160x32xf32>, vector<8x160xf32> -> vector<8x160xf32>
    %c0_4 = arith.constant 0 : index
    %c0_5 = arith.constant 0 : index
    %4 = vector.load %arg4[%c0_4, %c0_5] : memref<8x32xf32, #tpu.memory_space<vmem>>, vector<8x32xf32>
    %c0_6 = arith.constant 0 : index
    %c0_7 = arith.constant 0 : index
    %5 = vector.load %arg5[%c0_6, %c0_7] : memref<8x32xf32, #tpu.memory_space<vmem>>, vector<8x32xf32>
    %6 = vector.extract_strided_slice %3 {offsets = [0, 0], sizes = [8, 32], strides = [1, 1]} : vector<8x160xf32> to vector<8x32xf32>
    %7 = arith.mulf %6, %4 : vector<8x32xf32>
    %8 = vector.extract_strided_slice %3 {offsets = [0, 32], sizes = [8, 32], strides = [1, 1]} : vector<8x160xf32> to vector<8x32xf32>
    %9 = arith.mulf %8, %5 : vector<8x32xf32>
    %10 = arith.addf %7, %9 : vector<8x32xf32>
    %c0_8 = arith.constant 0 : index
    %c0_9 = arith.constant 0 : index
    %c0_10 = arith.constant 0 : index
    %11 = vector.load %arg6[%c0_8, %c0_9, %c0_10] : memref<1x8x32xf32, #tpu.memory_space<vmem>>, vector<1x8x32xf32>
    %12 = vector.shape_cast %11 : vector<1x8x32xf32> to vector<8x32xf32>
    %13 = vector.shape_cast %10 : vector<8x32xf32> to vector<1x8x32xf32>
    tpu.vector_store %arg6[%c0_8, %c0_9, %c0_10], %13 {strides = array<i32>} : memref<1x8x32xf32, #tpu.memory_space<vmem>>, vector<1x8x32xf32>,
    %14 = vector.extract_strided_slice %3 {offsets = [0, 64], sizes = [8, 32], strides = [1, 1]} : vector<8x160xf32> to vector<8x32xf32>
    %15 = arith.mulf %14, %4 : vector<8x32xf32>
    %16 = vector.extract_strided_slice %3 {offsets = [0, 96], sizes = [8, 32], strides = [1, 1]} : vector<8x160xf32> to vector<8x32xf32>
    %17 = arith.mulf %16, %5 : vector<8x32xf32>
    %18 = arith.addf %15, %17 : vector<8x32xf32>
    %c0_11 = arith.constant 0 : index
    %c0_12 = arith.constant 0 : index
    %c0_13 = arith.constant 0 : index
    %19 = vector.load %arg7[%c0_11, %c0_12, %c0_13] : memref<1x8x32xf32, #tpu.memory_space<vmem>>, vector<1x8x32xf32>
    %20 = vector.shape_cast %19 : vector<1x8x32xf32> to vector<8x32xf32>
    %21 = vector.shape_cast %18 : vector<8x32xf32> to vector<1x8x32xf32>
    tpu.vector_store %arg7[%c0_11, %c0_12, %c0_13], %21 {strides = array<i32>} : memref<1x8x32xf32, #tpu.memory_space<vmem>>, vector<1x8x32xf32>,
    %22 = vector.extract_strided_slice %3 {offsets = [0, 128], sizes = [8, 32], strides = [1, 1]} : vector<8x160xf32> to vector<8x32xf32>
    %c0_14 = arith.constant 0 : index
    %c0_15 = arith.constant 0 : index
    %c0_16 = arith.constant 0 : index
    %23 = vector.load %arg8[%c0_14, %c0_15, %c0_16] : memref<1x8x32xf32, #tpu.memory_space<vmem>>, vector<1x8x32xf32>
    %24 = vector.shape_cast %23 : vector<1x8x32xf32> to vector<8x32xf32>
    %25 = vector.shape_cast %22 : vector<8x32xf32> to vector<1x8x32xf32>
    tpu.vector_store %arg8[%c0_14, %c0_15, %c0_16], %25 {strides = array<i32>} : memref<1x8x32xf32, #tpu.memory_space<vmem>>, vector<1x8x32xf32>,
    return
  }
  func.func @transform_0(%arg0: i32, %arg1: i32) -> (i32, i32, i32) {
    %c0_i32 = arith.constant 0 : i32
    %c0_i32_0 = arith.constant 0 : i32
    return %arg0, %arg1, %c0_i32 : i32, i32, i32
  }
  func.func @transform_1(%arg0: i32, %arg1: i32) -> (i32, i32) {
    %c0_i32 = arith.constant 0 : i32
    %c0_i32_0 = arith.constant 0 : i32
    %c0_i32_1 = arith.constant 0 : i32
    return %c0_i32, %c0_i32_0 : i32, i32
  }
  func.func @transform_2(%arg0: i32, %arg1: i32) -> (i32, i32) {
    %c0_i32 = arith.constant 0 : i32
    %c0_i32_0 = arith.constant 0 : i32
    return %arg1, %c0_i32 : i32, i32
  }
  func.func @transform_3(%arg0: i32, %arg1: i32) -> (i32, i32) {
    %c0_i32 = arith.constant 0 : i32
    %c0_i32_0 = arith.constant 0 : i32
    return %arg1, %c0_i32 : i32, i32
  }
  func.func @transform_4(%arg0: i32, %arg1: i32) -> (i32, i32, i32) {
    %c0_i32 = arith.constant 0 : i32
    %c0_i32_0 = arith.constant 0 : i32
    return %arg0, %arg1, %c0_i32 : i32, i32, i32
  }
  func.func @transform_5(%arg0: i32, %arg1: i32) -> (i32, i32, i32) {
    %c0_i32 = arith.constant 0 : i32
    %c0_i32_0 = arith.constant 0 : i32
    return %arg0, %arg1, %c0_i32 : i32, i32, i32
  }
  func.func @transform_6(%arg0: i32, %arg1: i32) -> (i32, i32, i32) {
    %c0_i32 = arith.constant 0 : i32
    %c0_i32_0 = arith.constant 0 : i32
    return %arg0, %arg1, %c0_i32 : i32, i32, i32
  }
}

</mosaic_0001>

<llo_original>
// kernel: tpu_custom_call.1
$region0: #{tpu_custom_call.1}
  #allocation0 [shape = 'u32[]', space=smem, size = 0x4, offset = 0x4, fixed_abs, tag = 'smem constant byte address 0x4 - core index']
  #allocation1 [shape = 'u32[144,128]{1,0:T(1,128)}', space=vmem, size = 0x12000, scoped, tag = 'internal scratch']
  %s0 = inlined_call_operand.vmem [shape: f32[2,8,32], index: 0, kind: input, shape index: {}]
  %s1 = inlined_call_operand.vmem [shape: f32[160,32], index: 1, kind: input, shape index: {}]
  %s2 = inlined_call_operand.vmem [shape: f32[8,32], index: 2, kind: input, shape index: {}]
  %s3 = inlined_call_operand.vmem [shape: f32[8,32], index: 3, kind: input, shape index: {}]
  %s4 = inlined_call_operand.hbm [shape: f32[2,8,32], index: 4, kind: output, shape index: {0}]
  %s5 = inlined_call_operand.hbm [shape: f32[2,8,32], index: 5, kind: output, shape index: {1}]
  %s6 = inlined_call_operand.hbm [shape: f32[2,8,32], index: 6, kind: output, shape index: {2}]
  %7 = xla_tuple %s4, %s5, %s6
  %s8 = sld [smem:[#allocation0]]
  $region65: #{tpu_custom_call.1} parent=0
    _
  %s10 = ssub.s32 1, %s8
  %s11 = scalar_select 0, %s10, %s8
  $region1: #{tpu_custom_call.1} parent=0
    #allocation2 [shape = 'u8[8192]{0}', space=vmem, size = 0x2000, scoped, tag = 'output window, operand 0']
    #allocation3 [shape = 's32[2]{0}', space=sflag, size = 0x8, scoped, tag = 'scoped memory for tpu_custom_call.1']
    #allocation4 [shape = 'u8[8192]{0}', space=vmem, size = 0x2000, scoped, tag = 'output window, operand 1']
    #allocation5 [shape = 's32[2]{0}', space=sflag, size = 0x8, scoped, tag = 'scoped memory for tpu_custom_call.1']
    #allocation6 [shape = 'u8[8192]{0}', space=vmem, size = 0x2000, scoped, tag = 'output window, operand 2']
    %12 = vsyncpa [#allocation3], 0
    %s13 = scalar_lea.sflag [#allocation3], 1
    %14 = vsyncpa %s13, 0
    %15 = vsyncpa [#allocation5], 0
    %s16 = scalar_lea.sflag [#allocation5], 1
    %17 = vsyncpa %s16, 0
    loop: start=0, step=1, limit=4
    $region2: #{tpu_custom_call.1} parent=1 // loop_pre_header
      _
    $region3: #{tpu_custom_call.1} parent=1 // loop_header
      %s19 = sphi 0, %s23
      %p20 = scmp.ge.s32.totalorder %s19, 4
      %s26 = sphi 0, %s38
      %s27 = sphi 0, %s34
      %s28 = sphi 0, %s26
      %s29 = sphi 0, %s27
      %s30 = sphi 0, %s28
      %s31 = sphi 0, %s29
      %s43 = sphi 0, %s45
      %s46 = sphi 0, %s43
      %s47 = sphi 0, %s46
      %s63 = sphi 0, %s47
      %s67 = sphi 0, %s67
      %s69 = sphi 0, %s67
      %s70 = sphi 0, %s69
      %s84 = sphi 0, %s70
      %s90 = sphi 0, %s92
      %s93 = sphi 0, %s90
      %s94 = sphi 0, %s93
      %s110 = sphi 0, %s94
      %s116 = sphi 0, %s118
      %s119 = sphi 0, %s116
      %s120 = sphi 0, %s119
      %s136 = sphi 0, %s120
      %s144 = sphi 0, %s146
      %s147 = sphi 0, %s144
      %s148 = sphi 0, %s147
      %s164 = sphi 0, %s148
      %s172 = sphi 0, %s174
      %s175 = sphi 0, %s172
      %s176 = sphi 0, %s175
      %s192 = sphi 0, %s176
      %s200 = sphi 0, %s202
      %s203 = sphi 0, %s200
      %s204 = sphi 0, %s203
      %s220 = sphi 0, %s204
    $region4: #{tpu_custom_call.1} parent=1 // loop_header_branch
      %22 = sbr.rel (%p20) target = $region8
    $region5: #{tpu_custom_call.1} parent=1 // loop_body
      %s24 = ssub.s32 %s19, 1
      %s25 = ssub.s32 %s19, 2
      %s32 = sadd.s32 1, %s27
      %p33 = scmp.ge.s32.totalorder %s32, 1
      %s34 = scalar_select %p33, 0, %s32
      %s35 = sadd.s32 1, %s26
      %s36 = scalar_select %p33, %s35, %s26
      %p37 = scmp.ge.s32.totalorder %s36, 2
      %s38 = scalar_select %p37, 0, %s36
      %s39 = ssub.s32 %s26, %s38
      %s40 = ssub.s32 %s27, %s34
      %s41 = sor.u32 %s39, %s40
      %p42 = scmp.eq.s32.totalorder %s41, 0
      %s44 = sadd.s32 %s43, 1
      %s45 = scalar_select %p42, %s43, %s44
      %p48 = pneg %p42
      %p49 = scmp.eq.s32.totalorder %s19, 1
      %p50 = por %p48, %p49
      %p51 = scmp.ne.s32.totalorder %s43, %s46
      %p52 = scmp.eq.s32.totalorder %s19, 0
      %p53 = por %p51, %p52
      %p54 = scmp.ne.s32.totalorder %s43, %s46
      %p55 = scmp.eq.s32.totalorder %s24, 1
      %p56 = por %p54, %p55
      %p57 = scmp.ne.s32.totalorder %s46, %s47
      %p58 = scmp.eq.s32.totalorder %s24, 0
      %p59 = por %p57, %p58
      %p60 = scmp.ne.s32.totalorder %s46, %s47
      %p61 = scmp.eq.s32.totalorder %s25, 1
      %p62 = por %p60, %p61
      %p64 = scmp.ne.s32.totalorder %s47, %s63
      %p65 = scmp.eq.s32.totalorder %s25, 0
      %p66 = por %p64, %p65
      %s68 = sadd.s32 %s67, 1
      %p71 = scmp.eq.s32.totalorder %s19, 1
      %p72 = scmp.ne.s32.totalorder %s67, %s69
      %p73 = scmp.eq.s32.totalorder %s19, 0
      %p74 = por %p72, %p73
      %p75 = scmp.ne.s32.totalorder %s67, %s69
      %p76 = scmp.eq.s32.totalorder %s24, 1
      %p77 = por %p75, %p76
      %p78 = scmp.ne.s32.totalorder %s69, %s70
      %p79 = scmp.eq.s32.totalorder %s24, 0
      %p80 = por %p78, %p79
      %p81 = scmp.ne.s32.totalorder %s69, %s70
      %p82 = scmp.eq.s32.totalorder %s25, 1
      %p83 = por %p81, %p82
      %p85 = scmp.ne.s32.totalorder %s70, %s84
      %p86 = scmp.eq.s32.totalorder %s25, 0
      %p87 = por %p85, %p86
      %s88 = ssub.s32 %s27, %s34
      %p89 = scmp.eq.s32.totalorder %s88, 0
      %s91 = sadd.s32 %s90, 1
      %s92 = scalar_select %p89, %s90, %s91
      %p95 = pneg %p89
      %p96 = scmp.eq.s32.totalorder %s19, 1
      %p97 = por %p95, %p96
      %p98 = scmp.ne.s32.totalorder %s90, %s93
      %p99 = scmp.eq.s32.totalorder %s19, 0
      %p100 = por %p98, %p99
      %p101 = scmp.ne.s32.totalorder %s90, %s93
      %p102 = scmp.eq.s32.totalorder %s24, 1
      %p103 = por %p101, %p102
      %p104 = scmp.ne.s32.totalorder %s93, %s94
      %p105 = scmp.eq.s32.totalorder %s24, 0
      %p106 = por %p104, %p105
      %p107 = scmp.ne.s32.totalorder %s93, %s94
      %p108 = scmp.eq.s32.totalorder %s25, 1
      %p109 = por %p107, %p108
      %p111 = scmp.ne.s32.totalorder %s94, %s110
      %p112 = scmp.eq.s32.totalorder %s25, 0
      %p113 = por %p111, %p112
      %s114 = ssub.s32 %s27, %s34
      %p115 = scmp.eq.s32.totalorder %s114, 0
      %s117 = sadd.s32 %s116, 1
      %s118 = scalar_select %p115, %s116, %s117
      %p121 = pneg %p115
      %p122 = scmp.eq.s32.totalorder %s19, 1
      %p123 = por %p121, %p122
      %p124 = scmp.ne.s32.totalorder %s116, %s119
      %p125 = scmp.eq.s32.totalorder %s19, 0
      %p126 = por %p124, %p125
      %p127 = scmp.ne.s32.totalorder %s116, %s119
      %p128 = scmp.eq.s32.totalorder %s24, 1
      %p129 = por %p127, %p128
      %p130 = scmp.ne.s32.totalorder %s119, %s120
      %p131 = scmp.eq.s32.totalorder %s24, 0
      %p132 = por %p130, %p131
      %p133 = scmp.ne.s32.totalorder %s119, %s120
      %p134 = scmp.eq.s32.totalorder %s25, 1
      %p135 = por %p133, %p134
      %p137 = scmp.ne.s32.totalorder %s120, %s136
      %p138 = scmp.eq.s32.totalorder %s25, 0
      %p139 = por %p137, %p138
      %s140 = ssub.s32 %s26, %s38
      %s141 = ssub.s32 %s27, %s34
      %s142 = sor.u32 %s140, %s141
      %p143 = scmp.eq.s32.totalorder %s142, 0
      %s145 = sadd.s32 %s144, 1
      %s146 = scalar_select %p143, %s144, %s145
      %p149 = pneg %p143
      %p150 = scmp.eq.s32.totalorder %s19, 1
      %p151 = por %p149, %p150
      %p152 = scmp.ne.s32.totalorder %s144, %s147
      %p153 = scmp.eq.s32.totalorder %s19, 0
      %p154 = por %p152, %p153
      %p155 = scmp.ne.s32.totalorder %s144, %s147
      %p156 = scmp.eq.s32.totalorder %s24, 1
      %p157 = por %p155, %p156
      %p158 = scmp.ne.s32.totalorder %s147, %s148
      %p159 = scmp.eq.s32.totalorder %s24, 0
      %p160 = por %p158, %p159
      %p161 = scmp.ne.s32.totalorder %s147, %s148
      %p162 = scmp.eq.s32.totalorder %s25, 1
      %p163 = por %p161, %p162
      %p165 = scmp.ne.s32.totalorder %s148, %s164
      %p166 = scmp.eq.s32.totalorder %s25, 0
      %p167 = por %p165, %p166
      %s168 = ssub.s32 %s26, %s38
      %s169 = ssub.s32 %s27, %s34
      %s170 = sor.u32 %s168, %s169
      %p171 = scmp.eq.s32.totalorder %s170, 0
      %s173 = sadd.s32 %s172, 1
      %s174 = scalar_select %p171, %s172, %s173
      %p177 = pneg %p171
      %p178 = scmp.eq.s32.totalorder %s19, 1
      %p179 = por %p177, %p178
      %p180 = scmp.ne.s32.totalorder %s172, %s175
      %p181 = scmp.eq.s32.totalorder %s19, 0
      %p182 = por %p180, %p181
      %p183 = scmp.ne.s32.totalorder %s172, %s175
      %p184 = scmp.eq.s32.totalorder %s24, 1
      %p185 = por %p183, %p184
      %p186 = scmp.ne.s32.totalorder %s175, %s176
      %p187 = scmp.eq.s32.totalorder %s24, 0
      %p188 = por %p186, %p187
      %p189 = scmp.ne.s32.totalorder %s175, %s176
      %p190 = scmp.eq.s32.totalorder %s25, 1
      %p191 = por %p189, %p190
      %p193 = scmp.ne.s32.totalorder %s176, %s192
      %p194 = scmp.eq.s32.totalorder %s25, 0
      %p195 = por %p193, %p194
      %s196 = ssub.s32 %s26, %s38
      %s197 = ssub.s32 %s27, %s34
      %s198 = sor.u32 %s196, %s197
      %p199 = scmp.eq.s32.totalorder %s198, 0
      %s201 = sadd.s32 %s200, 1
      %s202 = scalar_select %p199, %s200, %s201
      %p205 = pneg %p199
      %p206 = scmp.eq.s32.totalorder %s19, 1
      %p207 = por %p205, %p206
      %p208 = scmp.ne.s32.totalorder %s200, %s203
      %p209 = scmp.eq.s32.totalorder %s19, 0
      %p210 = por %p208, %p209
      %p211 = scmp.ne.s32.totalorder %s200, %s203
      %p212 = scmp.eq.s32.totalorder %s24, 1
      %p213 = por %p211, %p212
      %p214 = scmp.ne.s32.totalorder %s203, %s204
      %p215 = scmp.eq.s32.totalorder %s24, 0
      %p216 = por %p214, %p215
      %p217 = scmp.ne.s32.totalorder %s203, %s204
      %p218 = scmp.eq.s32.totalorder %s25, 1
      %p219 = por %p217, %p218
      %p221 = scmp.ne.s32.totalorder %s204, %s220
      %p222 = scmp.eq.s32.totalorder %s25, 0
      %p223 = por %p221, %p222
      %p224 = scmp.le.s32.totalorder 1, %s19
      %p225 = scmp.lt.s32.totalorder %s19, 3
      %p226 = pnand %p224, %p225
      %p227 = pneg %p226
      // Predicated region
      $region9: #{tpu_custom_call.1} parent=5 // pred_check
        _
      $region10: #{tpu_custom_call.1} parent=5 // pred_check_branch
        %229 = sbr.rel (%p226) target = $region12
      $region11: #{tpu_custom_call.1} parent=5 // pred_region
        %s230 = ssub.s32 %s19, 1
        // Predicated region
        $region13: #{tpu_custom_call.1} parent=11 // pred_check
          %p231 = pneg %p80
        $region14: #{tpu_custom_call.1} parent=11 // pred_check_branch
          %233 = sbr.rel (%p231) target = $region16
        $region15: #{tpu_custom_call.1} parent=11 // pred_region
          _
        $region16: #{tpu_custom_call.1} parent=11 // pred_fallthru
          _
        // Predicated region
        $region17: #{tpu_custom_call.1} parent=11 // pred_check
          %p234 = pneg %p106
        $region18: #{tpu_custom_call.1} parent=11 // pred_check_branch
          %236 = sbr.rel (%p234) target = $region20
        $region19: #{tpu_custom_call.1} parent=11 // pred_region
          %p237 = scmp.lt.s32.totalorder %s29, 0
          %s238 = scalar_select %p237, %s29, 0
          %s239 = smul.addr %s238, 8
          %s240 = scalar_lea.vmem %s2, %s239
        $region20: #{tpu_custom_call.1} parent=11 // pred_fallthru
          _
        // Predicated region
        $region21: #{tpu_custom_call.1} parent=11 // pred_check
          %p241 = pneg %p132
        $region22: #{tpu_custom_call.1} parent=11 // pred_check_branch
          %243 = sbr.rel (%p241) target = $region24
        $region23: #{tpu_custom_call.1} parent=11 // pred_region
          %p244 = scmp.lt.s32.totalorder %s29, 0
          %s245 = scalar_select %p244, %s29, 0
          %s246 = smul.addr %s245, 8
          %s247 = scalar_lea.vmem %s3, %s246
        $region24: #{tpu_custom_call.1} parent=11 // pred_fallthru
          _
      $region12: #{tpu_custom_call.1} parent=5 // pred_fallthru
        _
      %p248 = scmp.lt.s32.totalorder %s19, 2
      // Predicated region
      $region25: #{tpu_custom_call.1} parent=5 // pred_check
        %p249 = pneg %p248
      $region26: #{tpu_custom_call.1} parent=5 // pred_check_branch
        %251 = sbr.rel (%p249) target = $region28
      $region27: #{tpu_custom_call.1} parent=5 // pred_region
        // Predicated region
        $region29: #{tpu_custom_call.1} parent=27 // pred_check
          %p252 = pneg %p53
        $region30: #{tpu_custom_call.1} parent=27 // pred_check_branch
          %254 = sbr.rel (%p252) target = $region32
        $region31: #{tpu_custom_call.1} parent=27 // pred_region
          %p255 = scmp.lt.s32.totalorder %s26, 1
          %s256 = scalar_select %p255, %s26, 1
          %p257 = scmp.lt.s32.totalorder %s27, 0
          %s258 = scalar_select %p257, %s27, 0
          %s259 = sadd.s32 %s258, %s256
          %s260 = smul.addr %s259, 8
          %s261 = scalar_lea.vmem %s0, %s260
        $region32: #{tpu_custom_call.1} parent=27 // pred_fallthru
          _
      $region28: #{tpu_custom_call.1} parent=5 // pred_fallthru
        _
      %p262 = scmp.le.s32.totalorder 1, %s19
      %p263 = scmp.lt.s32.totalorder %s19, 3
      %p264 = pnand %p262, %p263
      %p265 = pneg %p264
      // Predicated region
      $region33: #{tpu_custom_call.1} parent=5 // pred_check
        _
      $region34: #{tpu_custom_call.1} parent=5 // pred_check_branch
        %267 = sbr.rel (%p264) target = $region36
      $region35: #{tpu_custom_call.1} parent=5 // pred_region
        %s268 = ssub.s32 %s19, 1
        %p269 = scmp.lt.s32.totalorder %s28, 1
        %s270 = scalar_select %p269, %s28, 1
        %p271 = scmp.lt.s32.totalorder %s29, 0
        %s272 = scalar_select %p271, %s29, 0
        %s273 = sadd.s32 %s272, %s270
        %s274 = smul.addr %s273, 8
        %s275 = scalar_lea.vmem %s0, %s274
        %p276 = pneg %p59
        %p277 = pneg %p56
        %p278 = pneg %p80
        %p279 = pneg %p77
        %p280 = scmp.lt.s32.totalorder %s29, 0
        %s281 = scalar_select %p280, %s29, 0
        %s282 = smul.addr %s281, 8
        %s283 = scalar_lea.vmem %s2, %s282
        %p284 = pneg %p106
        %p285 = pneg %p103
        %p286 = scmp.lt.s32.totalorder %s29, 0
        %s287 = scalar_select %p286, %s29, 0
        %s288 = smul.addr %s287, 8
        %s289 = scalar_lea.vmem %s3, %s288
        %p290 = pneg %p132
        %p291 = pneg %p129
        %p292 = pneg %p160
        %p293 = pneg %p157
        %s294 = sand.u32 %s147, 1
        %s295 = scalar_lea.sflag [#allocation3], %s294
        %s296 = sand.u32 %s147, 1
        %s297 = smul.addr %s296, 8
        %s298 = scalar_lea.vmem [#allocation2], %s297
        %p299 = pneg %p188
        %p300 = pneg %p185
        %s301 = sand.u32 %s24, 1
        %s302 = scalar_lea.sflag [#allocation5], %s301
        %s303 = sand.u32 %s175, 1
        %s304 = smul.addr %s303, 8
        %s305 = scalar_lea.vmem [#allocation4], %s304
        %p306 = pneg %p216
        %p307 = pneg %p213
        %s308 = sand.u32 %s24, 1
        %s309 = scalar_lea.sflag [#allocation5], %s308
        %s310 = sand.u32 %s203, 1
        %s311 = smul.addr %s310, 8
        %s312 = scalar_lea.vmem [#allocation6], %s311
        %p313 = scmp.lt.s32.totalorder %s28, 1
        %s314 = scalar_select %p313, %s28, 1
        %p315 = scmp.lt.s32.totalorder %s29, 0
        %s316 = scalar_select %p315, %s29, 0
        %s317 = sadd.s32 %s316, %s314
        %s318 = smul.addr %s317, 8
        %s319 = scalar_lea.vmem %s0, %s318
        %p320 = scmp.lt.s32.totalorder %s29, 0
        %s321 = scalar_select %p320, %s29, 0
        %s322 = smul.addr %s321, 8
        %s323 = scalar_lea.vmem %s2, %s322
        %p324 = scmp.lt.s32.totalorder %s29, 0
        %s325 = scalar_select %p324, %s29, 0
        %s326 = smul.addr %s325, 8
        %s327 = scalar_lea.vmem %s3, %s326
        %v328 = vld [vmem:[%s319] sm:$0xff]
        %v329 = vld [vmem:[%s1] sm:$0xff]
        %v330 = vld [vmem:[%s1 + $0x8] sm:$0xff]
        %v331 = vld [vmem:[%s1 + $0x10] sm:$0xff]
        %v332 = vld [vmem:[%s1 + $0x18] sm:$0xff]
        %v333 = vld [vmem:[%s1 + $0x20] sm:$0xff]
        %v334 = vld [vmem:[%s1 + $0x28] sm:$0xff]
        %v335 = vld [vmem:[%s1 + $0x30] sm:$0xff]
        %v336 = vld [vmem:[%s1 + $0x38] sm:$0xff]
        %v337 = vld [vmem:[%s1 + $0x40] sm:$0xff]
        %v338 = vld [vmem:[%s1 + $0x48] sm:$0xff]
        %v339 = vld [vmem:[%s1 + $0x50] sm:$0xff]
        %v340 = vld [vmem:[%s1 + $0x58] sm:$0xff]
        %v341 = vld [vmem:[%s1 + $0x60] sm:$0xff]
        %v342 = vld [vmem:[%s1 + $0x68] sm:$0xff]
        %v343 = vld [vmem:[%s1 + $0x70] sm:$0xff]
        %v344 = vld [vmem:[%s1 + $0x78] sm:$0xff]
        %v345 = vld [vmem:[%s1 + $0x80] sm:$0xff]
        %v346 = vld [vmem:[%s1 + $0x88] sm:$0xff]
        %v347 = vld [vmem:[%s1 + $0x90] sm:$0xff]
        %v348 = vld [vmem:[%s1 + $0x98] sm:$0xff]
        %vm349 = vcmask 261120
        %v351 = vsel %vm349, %v328, 0
        %v354 = vsel %vm349, %v329, 0
        %v357 = vsel %vm349, %v330, 0
        %v360 = vsel %vm349, %v331, 0
        %v363 = vsel %vm349, %v332, 0
        %v366 = vsel %vm349, %v333, 0
        %v369 = vsel %vm349, %v334, 0
        %v372 = vsel %vm349, %v335, 0
        %v375 = vsel %vm349, %v336, 0
        %v378 = vsel %vm349, %v337, 0
        %v381 = vsel %vm349, %v338, 0
        %v384 = vsel %vm349, %v339, 0
        %v387 = vsel %vm349, %v340, 0
        %v390 = vsel %vm349, %v341, 0
        %v393 = vsel %vm349, %v342, 0
        %v396 = vsel %vm349, %v343, 0
        %v399 = vsel %vm349, %v344, 0
        %v402 = vsel %vm349, %v345, 0
        %v405 = vsel %vm349, %v346, 0
        %v408 = vsel %vm349, %v347, 0
        %v411 = vsel %vm349, %v348, 0
        %413 = vmatprep.subr.mxu0 0.0
        %414 = vmatpush1.xpose.msra.mxu0 %v399
        %415 = vmatprep.subr.mxu0 0.0
        %416 = vmatpush1.xpose.msra.mxu0 %v396
        %417 = vmatprep.subr.mxu0 0.0
        %418 = vmatpush1.xpose.msra.mxu0 %v393
        %419 = vmatprep.subr.mxu0 0.0
        %420 = vmatpush1.xpose.msra.mxu0 %v390
        %421 = vmatprep.subr.mxu0 0.0
        %422 = vmatpush1.xpose.msra.mxu0 %v387
        %423 = vmatprep.subr.mxu0 0.0
        %424 = vmatpush1.xpose.msra.mxu0 %v384
        %425 = vmatprep.subr.mxu0 0.0
        %426 = vmatpush1.xpose.msra.mxu0 %v381
        %427 = vmatprep.subr.mxu0 0.0
        %428 = vmatpush1.xpose.msra.mxu0 %v378
        %429 = vmatprep.subr.mxu0 0.0
        %430 = vmatpush1.xpose.msra.mxu0 %v375
        %431 = vmatprep.subr.mxu0 0.0
        %432 = vmatpush1.xpose.msra.mxu0 %v372
        %433 = vmatprep.subr.mxu0 0.0
        %434 = vmatpush1.xpose.msra.mxu0 %v369
        %435 = vmatprep.subr.mxu0 0.0
        %436 = vmatpush1.xpose.msra.mxu0 %v366
        %437 = vmatprep.subr.mxu0 0.0
        %438 = vmatpush1.xpose.msra.mxu0 %v363
        %439 = vmatprep.subr.mxu0 0.0
        %440 = vmatpush1.xpose.msra.mxu0 %v360
        %441 = vmatprep.subr.mxu0 0.0
        %442 = vmatpush1.xpose.msra.mxu0 %v357
        %443 = vmatprep.subr.mxu0 0.0
        %444 = vmatpush1.xpose.msra.mxu0 %v354
        %445 = vmatprep.subr.mxu0 0.0
        %446 = vmatpush2.xpose.msra.mxu0 0.0
        %447 = vmatprep.subr.mxu0 0.0
        %448 = vmatpush2.xpose.msra.mxu0 0.0
        %449 = vmatprep.subr.mxu0 0.0
        %450 = vmatpush2.xpose.msra.mxu0 0.0
        %451 = vmatprep.subr.mxu0 0.0
        %452 = vmatpush2.xpose.msra.mxu0 0.0
        %453 = vmatprep.subr.mxu0 0.0
        %454 = vmatpush2.xpose.msra.mxu0 0.0
        %455 = vmatprep.subr.mxu0 0.0
        %456 = vmatpush2.xpose.msra.mxu0 0.0
        %457 = vmatprep.subr.mxu0 0.0
        %458 = vmatpush2.xpose.msra.mxu0 0.0
        %459 = vmatprep.subr.mxu0 0.0
        %460 = vmatpush2.xpose.msra.mxu0 0.0
        %461 = vmatprep.subr.mxu0 0.0
        %462 = vmatpush2.xpose.msra.mxu0 0.0
        %463 = vmatprep.subr.mxu0 0.0
        %464 = vmatpush2.xpose.msra.mxu0 0.0
        %465 = vmatprep.subr.mxu0 0.0
        %466 = vmatpush2.xpose.msra.mxu0 0.0
        %467 = vmatprep.subr.mxu0 0.0
        %468 = vmatpush2.xpose.msra.mxu0 0.0
        %469 = vmatprep.subr.mxu0 0.0
        %470 = vmatpush2.xpose.msra.mxu0 %v411
        %471 = vmatprep.subr.mxu0 0.0
        %472 = vmatpush2.xpose.msra.mxu0 %v408
        %473 = vmatprep.subr.mxu0 0.0
        %474 = vmatpush2.xpose.msra.mxu0 %v405
        %475 = vmatprep.subr.mxu0 0.0
        %476 = vmatpush2.xpose.msra.mxu0 %v402
        %477 = vmatprep.mubr.f32.mxu0 0.0
        %478 = vmatmul.mubr.f32.gmra.mxu0 %v351
        %v479 = vpop.f32.mrf.mxu0
        %v480 = vadd.f32 0.0, %v479
        %v481 = vpop.f32.mrf.mxu0
        %v482 = vadd.f32 0.0, %v481
        %483 = vdwg.mxu0
        %v484 = vld [vmem:[%s323] sm:$0xff]
        %v485 = vld [vmem:[%s327] sm:$0xff]
        %v486 = vmul.f32 %v480, %v484
        %488 = vrot.lane.b32.xlu0 %v485, 32
        %v489 = vpop.permute.xlu0 %488
        %v491 = vmul.f32 %v480, %v489
        %493 = vrot.lane.b32.xlu0 %v491, 96
        %v494 = vpop.permute.xlu0 %493
        %v496 = vadd.f32 %v486, %v494
        %497 = vst.msk [vmem:[%s298] sm:$0xff] %vm349, %v496
        %499 = vrot.lane.b32.xlu0 %v484, 64
        %v500 = vpop.permute.xlu0 %499
        %v502 = vmul.f32 %v480, %v500
        %503 = vrot.lane.b32.xlu0 %v485, 96
        %v504 = vpop.permute.xlu0 %503
        %v506 = vmul.f32 %v480, %v504
        %508 = vrot.lane.b32.xlu0 %v506, 96
        %v509 = vpop.permute.xlu0 %508
        %v511 = vadd.f32 %v502, %v509
        %513 = vrot.lane.b32.xlu0 %v511, 64
        %v514 = vpop.permute.xlu0 %513
        %516 = vst.msk [vmem:[%s305] sm:$0xff] %vm349, %v514
        %517 = vst.msk [vmem:[%s312] sm:$0xff] %vm349, %v482
        %s518 = sand.u32 %s147, 1
        %s519 = scalar_lea.sflag [#allocation3], %s518
        %s520 = sand.u32 %s147, 1
        %s521 = smul.addr %s520, 8
        %s522 = scalar_lea.vmem [#allocation2], %s521
        %s523 = sand.u32 %s24, 1
        %s524 = scalar_lea.sflag [#allocation5], %s523
        %s525 = sand.u32 %s175, 1
        %s526 = smul.addr %s525, 8
        %s527 = scalar_lea.vmem [#allocation4], %s526
        %s528 = sand.u32 %s24, 1
        %s529 = scalar_lea.sflag [#allocation5], %s528
        %s530 = sand.u32 %s203, 1
        %s531 = smul.addr %s530, 8
        %s532 = scalar_lea.vmem [#allocation6], %s531
        // Predicated region
        $region37: #{tpu_custom_call.1} parent=35 // pred_check
          %p533 = pneg %p157
        $region38: #{tpu_custom_call.1} parent=35 // pred_check_branch
          %535 = sbr.rel (%p533) target = $region40
        $region39: #{tpu_custom_call.1} parent=35 // pred_region
          %s537 = ssub.s32 128, 128
          %538 = vsyncadd %s519, %s537
          %s539 = sadd.s32 %s29, %s28
          %s540 = smul.addr %s539, 128
          %s541 = scalar_lea.hbm %s4, %s540
          %s543 = sshll.u32 %s522, 4
          %s544 = int_to_ptr.vmem [resolvable:$true] %s543
          %546 = dma.vmem_to_hbm [thread:$0]  %s544, 128, %s541, %s519
        $region40: #{tpu_custom_call.1} parent=35 // pred_fallthru
          _
        // Predicated region
        $region41: #{tpu_custom_call.1} parent=35 // pred_check
          %p547 = pneg %p185
        $region42: #{tpu_custom_call.1} parent=35 // pred_check_branch
          %549 = sbr.rel (%p547) target = $region44
        $region43: #{tpu_custom_call.1} parent=35 // pred_region
          %s551 = ssub.s32 128, 128
          %552 = vsyncadd %s524, %s551
          %s553 = sadd.s32 %s29, %s28
          %s554 = smul.addr %s553, 128
          %s555 = scalar_lea.hbm %s5, %s554
          %s557 = sshll.u32 %s527, 4
          %s558 = int_to_ptr.vmem [resolvable:$true] %s557
          %560 = dma.vmem_to_hbm [thread:$0]  %s558, 128, %s555, %s524
        $region44: #{tpu_custom_call.1} parent=35 // pred_fallthru
          _
        // Predicated region
        $region45: #{tpu_custom_call.1} parent=35 // pred_check
          %p561 = pneg %p213
        $region46: #{tpu_custom_call.1} parent=35 // pred_check_branch
          %563 = sbr.rel (%p561) target = $region48
        $region47: #{tpu_custom_call.1} parent=35 // pred_region
          %s565 = ssub.s32 128, 128
          %566 = vsyncadd %s529, %s565
          %s567 = sadd.s32 %s29, %s28
          %s568 = smul.addr %s567, 128
          %s569 = scalar_lea.hbm %s6, %s568
          %s571 = sshll.u32 %s532, 4
          %s572 = int_to_ptr.vmem [resolvable:$true] %s571
          %574 = dma.vmem_to_hbm [thread:$0]  %s572, 128, %s569, %s529
        $region48: #{tpu_custom_call.1} parent=35 // pred_fallthru
          _
      $region36: #{tpu_custom_call.1} parent=5 // pred_fallthru
        _
      %p575 = scmp.le.s32.totalorder 2, %s19
      // Predicated region
      $region49: #{tpu_custom_call.1} parent=5 // pred_check
        %p576 = pneg %p575
      $region50: #{tpu_custom_call.1} parent=5 // pred_check_branch
        %578 = sbr.rel (%p576) target = $region52
      $region51: #{tpu_custom_call.1} parent=5 // pred_region
        %s579 = ssub.s32 %s19, 2
        // Predicated region
        $region53: #{tpu_custom_call.1} parent=51 // pred_check
          %p580 = pneg %p163
        $region54: #{tpu_custom_call.1} parent=51 // pred_check_branch
          %582 = sbr.rel (%p580) target = $region56
        $region55: #{tpu_custom_call.1} parent=51 // pred_region
          %s583 = sand.u32 %s148, 1
          %s584 = scalar_lea.sflag [#allocation3], %s583
          %s585 = sand.u32 %s148, 1
          %s586 = smul.addr %s585, 8
          %s587 = scalar_lea.vmem [#allocation2], %s586
          %588 = dma.done %s584, 128
        $region56: #{tpu_custom_call.1} parent=51 // pred_fallthru
          _
        // Predicated region
        $region57: #{tpu_custom_call.1} parent=51 // pred_check
          %p589 = pneg %p191
        $region58: #{tpu_custom_call.1} parent=51 // pred_check_branch
          %591 = sbr.rel (%p589) target = $region60
        $region59: #{tpu_custom_call.1} parent=51 // pred_region
          %s592 = sand.u32 %s25, 1
          %s593 = scalar_lea.sflag [#allocation5], %s592
          %s594 = sand.u32 %s176, 1
          %s595 = smul.addr %s594, 8
          %s596 = scalar_lea.vmem [#allocation4], %s595
          %597 = dma.done %s593, 128
        $region60: #{tpu_custom_call.1} parent=51 // pred_fallthru
          _
        // Predicated region
        $region61: #{tpu_custom_call.1} parent=51 // pred_check
          %p598 = pneg %p219
        $region62: #{tpu_custom_call.1} parent=51 // pred_check_branch
          %600 = sbr.rel (%p598) target = $region64
        $region63: #{tpu_custom_call.1} parent=51 // pred_region
          %s601 = sand.u32 %s25, 1
          %s602 = scalar_lea.sflag [#allocation5], %s601
          %s603 = sand.u32 %s204, 1
          %s604 = smul.addr %s603, 8
          %s605 = scalar_lea.vmem [#allocation6], %s604
          %606 = dma.done %s602, 128
        $region64: #{tpu_custom_call.1} parent=51 // pred_fallthru
          _
      $region52: #{tpu_custom_call.1} parent=5 // pred_fallthru
        _
    $region6: #{tpu_custom_call.1} parent=1 // loop_footer
      %s23 = sadd.s32 1, %s19
    $region7: #{tpu_custom_call.1} parent=1 // loop_footer_branch
      %18 = sbr.rel target = $region3
    $region8: #{tpu_custom_call.1} parent=1 // loop_exit
      _
    %607 = vsyncpa [#allocation3], 1
    %s608 = scalar_lea.sflag [#allocation3], 1
    %609 = vsyncpa %s608, 1
    %610 = vsyncpa [#allocation5], 1
    %s611 = scalar_lea.sflag [#allocation5], 1
    %612 = vsyncpa %s611, 1

</llo_original>
